<compile_context>
chip_gen: v7x
topology: tpu7x:2x2x1
jax: 0.10.0
libtpu: 0.0.40
codegen_flags: <defaults>
</compile_context>

<pallas_src>
import functools

import numpy as np
import jax
import jax.numpy as jnp
from jax import lax
from jax.experimental import pallas as pl
from jax.experimental.pallas import tpu as pltpu


def _round_up(x, m):
    return ((x + m - 1) // m) * m


# ----------------------------------------------------------------------------
# Deterministic parameter construction (mirrors STFT.__init__ / librosa.filters.mel)
# ----------------------------------------------------------------------------
def make_fourier_basis(filter_length):
    """Real/imag DFT basis as used by the classic pytorch-stft STFT module."""
    fourier_basis = np.fft.fft(np.eye(filter_length))
    cutoff = filter_length // 2 + 1
    basis_re = np.real(fourier_basis[:cutoff, :]).astype(np.float32)  # (C, F)
    basis_im = np.imag(fourier_basis[:cutoff, :]).astype(np.float32)  # (C, F)
    return basis_re, basis_im


def _hz_to_mel(freqs):
    freqs = np.asarray(freqs, dtype=np.float64)
    f_min, f_sp = 0.0, 200.0 / 3
    mels = (freqs - f_min) / f_sp
    min_log_hz = 1000.0
    min_log_mel = (min_log_hz - f_min) / f_sp
    logstep = np.log(6.4) / 27.0
    return np.where(freqs >= min_log_hz,
                    min_log_mel + np.log(np.maximum(freqs, 1e-10) / min_log_hz) / logstep,
                    mels)


def _mel_to_hz(mels):
    mels = np.asarray(mels, dtype=np.float64)
    f_min, f_sp = 0.0, 200.0 / 3
    freqs = f_min + f_sp * mels
    min_log_hz = 1000.0
    min_log_mel = (min_log_hz - f_min) / f_sp
    logstep = np.log(6.4) / 27.0
    return np.where(mels >= min_log_mel,
                    min_log_hz * np.exp(logstep * (mels - min_log_mel)),
                    freqs)


def make_mel_filter_bank(sample_rate, n_fft, n_mels):
    """Slaney-normalized mel filterbank, equivalent to librosa.filters.mel defaults."""
    fmin, fmax = 0.0, sample_rate / 2.0
    n_freqs = n_fft // 2 + 1
    fftfreqs = np.linspace(0.0, sample_rate / 2.0, n_freqs)
    mel_pts = np.linspace(_hz_to_mel(fmin), _hz_to_mel(fmax), n_mels + 2)
    mel_f = _mel_to_hz(mel_pts)
    fdiff = np.diff(mel_f)
    ramps = mel_f[:, None] - fftfreqs[None, :]
    lower = -ramps[:-2] / fdiff[:-1, None]
    upper = ramps[2:] / fdiff[1:, None]
    weights = np.maximum(0.0, np.minimum(lower, upper))
    enorm = 2.0 / (mel_f[2:n_mels + 2] - mel_f[:n_mels])
    weights *= enorm[:, None]
    return weights.astype(np.float32)  # (M, C)


# ----------------------------------------------------------------------------
# Pallas kernel: time-tiled frames -> log-mel spectrogram (time on lanes)
# ----------------------------------------------------------------------------
def _logmel_kernel(frames_ref, basis_ref, mel_ref, out_ref, *, cpad):
    # frames_ref: (tT, F)        one time-tile of frames for one batch element
    # basis_ref:  (2*cpad, F)    fused [real ; imag] DFT basis (zero-padded rows)
    # mel_ref:    (M, cpad)      mel filterbank (zero-padded channel columns)
    # out_ref:    (M, tT)        log-mel, time on lanes -> lane-dense stores
    #
    # Single fused MXU matmul contracting the frame-sample axis (F) of both operands
    # (same "q @ k.T" contraction pattern as flash attention):
    proj = lax.dot_general(
        basis_ref[...], frames_ref[...],
        dimension_numbers=(((1,), (1,)), ((), ())),
        preferred_element_type=jnp.float32)                    # (2*cpad, tT) f32
    sq = proj * proj
    # Aligned sublane split (cpad is a multiple of 8): re^2 + im^2 -> magnitude.
    mag = jnp.sqrt(sq[:cpad, :] + sq[cpad:, :])                # (cpad, tT)
    mel = jnp.dot(mel_ref[...], mag,
                  preferred_element_type=jnp.float32)          # (M, tT)
    out_ref[...] = np.float32(10.0 / np.log(10.0)) * jnp.log(mel * mel + np.float32(1e-8))


def mel_spectrogram(audio, *, sample_rate=8000, filter_length=64, hop_length=32,
                    num_mels=16, time_tile=512, matmul_dtype=jnp.float32):
    """audio: (B, num_samples) float32 -> log-mel spectrogram (B, T, num_mels).

    `matmul_dtype=jnp.bfloat16` is the v6e/v7x knob from the perf review (halves frame
    HBM traffic / MXU work); kept at float32 by default for exact parity with the f32
    reference (elementwise magnitude/log math is always f32 inside the kernel).
    """
    B, num_samples = audio.shape
    F = filter_length
    hop = hop_length
    M = num_mels
    C = F // 2 + 1
    cpad = _round_up(C, 8)                 # 8-aligned channel padding (zeros are inert)

    basis_re, basis_im = make_fourier_basis(F)           # (C, F) each
    mel_fb = make_mel_filter_bank(sample_rate, F, M)     # (M, C)

    # Fused, row-packed DFT basis: rows [0, C) = real, rows [cpad, cpad+C) = imag.
    fused_basis = np.zeros((2 * cpad, F), np.float32)
    fused_basis[:C, :] = basis_re
    fused_basis[cpad:cpad + C, :] = basis_im
    # Mel bank padded along channels (zero cols contribute nothing).
    mel_pad = np.zeros((M, cpad), np.float32)
    mel_pad[:, :C] = mel_fb

    # Frame count identical to F.conv1d(..., stride=hop, padding=filter_length).
    T = (num_samples + 2 * F - F) // hop + 1
    tT = min(time_tile, _round_up(T, 128))               # lane-dense time tile
    Tpad = _round_up(T, tT)
    nT = Tpad // tT

    # ---- Frame assembly (XLA glue). Extra frames [T, Tpad) land entirely in the zero
    # tail and are sliced off after the kernel. ----
    if F % hop == 0:
        # hop-chunk path: no gather, just reshape + concat of shifted chunk views.
        q = F // hop
        l_ext = (Tpad + q) * hop
        ext = jnp.pad(audio, ((0, 0), (F, l_ext - F - num_samples)))
        chunks = ext.reshape(B, l_ext // hop, hop)
        frames = jnp.concatenate([chunks[:, i:i + Tpad, :] for i in range(q)], axis=-1)
    else:
        l_ext = (Tpad - 1) * hop + F
        ext = jnp.pad(audio, ((0, 0), (F, max(l_ext - F - num_samples, 0))))
        idx = jnp.arange(Tpad)[:, None] * hop + jnp.arange(F)[None, :]
        frames = ext[:, idx]                              # (B, Tpad, F)
    frames = frames.astype(matmul_dtype)

    fused_j = jnp.asarray(fused_basis).astype(matmul_dtype)
    mel_j = jnp.asarray(mel_pad)                          # mel matmul stays f32

    cost = pl.CostEstimate(
        flops=2 * B * Tpad * (2 * cpad * F + M * cpad),
        transcendentals=B * Tpad * (cpad + M),
        bytes_accessed=4 * (B * Tpad * F + B * M * Tpad + 2 * cpad * F + M * cpad),
    )

    out = pl.pallas_call(
        functools.partial(_logmel_kernel, cpad=cpad),
        out_shape=jax.ShapeDtypeStruct((B, M, Tpad), jnp.float32),
        grid_spec=pltpu.PrefetchScalarGridSpec(
            num_scalar_prefetch=0,
            grid=(B, nT),
            in_specs=[
                # batch dim squeezed out of the kernel ref via None block dim
                pl.BlockSpec((None, tT, F), lambda b, t: (b, t, 0)),
                pl.BlockSpec((2 * cpad, F), lambda b, t: (0, 0)),
                pl.BlockSpec((M, cpad), lambda b, t: (0, 0)),
            ],
            out_specs=pl.BlockSpec((None, M, tT), lambda b, t: (b, 0, t)),
        ),
        compiler_params=pltpu.CompilerParams(
            dimension_semantics=("parallel", "parallel"),
        ),
        cost_estimate=cost,
    )(frames, fused_j, mel_j)

    # Back to the PyTorch forward's (B, T, num_mels) layout; drop padded frames.
    return jnp.swapaxes(out, 1, 2)[:, :T, :]


def mel_spectrogram_reference(audio, *, sample_rate=8000, filter_length=64,
                              hop_length=32, num_mels=16):
    """Pure-JAX reference with identical math, for a sanity check."""
    B, num_samples = audio.shape
    F = filter_length
    basis_re, basis_im = make_fourier_basis(F)
    mel_fb = make_mel_filter_bank(sample_rate, F, num_mels)
    padded = jnp.pad(audio, ((0, 0), (F, F)))
    T = (num_samples + 2 * F - F) // hop_length + 1
    frame_idx = (jnp.arange(T)[:, None] * hop_length + jnp.arange(F)[None, :])
    frames = padded[:, frame_idx]                               # (B, T, F)
    re = jnp.einsum("btf,cf->btc", frames, jnp.asarray(basis_re))
    im = jnp.einsum("btf,cf->btc", frames, jnp.asarray(basis_im))
    mag = jnp.sqrt(re * re + im * im)
    mel = jnp.einsum("btc,mc->btm", mag, jnp.asarray(mel_fb))
    return 10.0 * (jnp.log(mel * mel + 1e-8) / np.log(10.0))


if __name__ == "__main__":
    key = jax.random.PRNGKey(0)
    B, num_samples = 2, 256
    audio = jax.random.normal(key, (B, num_samples), dtype=jnp.float32)

    out = mel_spectrogram(audio, sample_rate=8000, filter_length=64,
                          hop_length=32, num_mels=16)
    out = jax.block_until_ready(out)

    ref = mel_spectrogram_reference(audio, sample_rate=8000, filter_length=64,
                                    hop_length=32, num_mels=16)
    np.testing.assert_allclose(np.asarray(out), np.asarray(ref), rtol=1e-4, atol=1e-3)

    print("KERNEL_OK")
</pallas_src>

<mosaic_0001>
module attributes {stable_mosaic.version = 11 : i64} {
  func.func @_logmel_kernel(%arg0: i32, %arg1: i32, %arg2: memref<1x128x64xf32, #tpu.memory_space<vmem>>, %arg3: memref<80x64xf32, #tpu.memory_space<vmem>>, %arg4: memref<16x40xf32, #tpu.memory_space<vmem>>, %arg5: memref<1x16x128xf32, #tpu.memory_space<vmem>>) attributes {dimension_semantics = [#tpu.dimension_semantics<parallel>, #tpu.dimension_semantics<parallel>], iteration_bounds = array<i64: 2, 1>, scalar_prefetch = 0 : i64, scratch_operands = 0 : i64, tpu.core_type = #tpu.core_type<tc>, window_params = [{transform_indices = @transform_0, window_bounds = array<i64: 1, 128, 64>}, {pipeline_mode = #tpu.pipeline_mode<synchronous>, transform_indices = @transform_1, window_bounds = array<i64: 80, 64>}, {pipeline_mode = #tpu.pipeline_mode<synchronous>, transform_indices = @transform_2, window_bounds = array<i64: 16, 40>}, {transform_indices = @transform_3, window_bounds = array<i64: 1, 16, 128>}]} {
    %c0 = arith.constant 0 : index
    %c0_0 = arith.constant 0 : index
    %0 = vector.load %arg3[%c0, %c0_0] : memref<80x64xf32, #tpu.memory_space<vmem>>, vector<80x64xf32>
    %c0_1 = arith.constant 0 : index
    %c0_2 = arith.constant 0 : index
    %c0_3 = arith.constant 0 : index
    %1 = vector.load %arg2[%c0_1, %c0_2, %c0_3] : memref<1x128x64xf32, #tpu.memory_space<vmem>>, vector<1x128x64xf32>
    %2 = vector.shape_cast %1 : vector<1x128x64xf32> to vector<128x64xf32>
    %cst = arith.constant dense<0.000000e+00> : vector<80x128xf32>
    %3 = tpu.matmul %0, %2, %cst {dimension_numbers = #tpu.dot_dimension_numbers<[1], [1], [0], [0], [0, 0, 1, 0], [], []>} : vector<80x64xf32>, vector<128x64xf32>, vector<80x128xf32> -> vector<80x128xf32>
    %4 = arith.mulf %3, %3 : vector<80x128xf32>
    %5 = vector.extract_strided_slice %4 {offsets = [0, 0], sizes = [40, 128], strides = [1, 1]} : vector<80x128xf32> to vector<40x128xf32>
    %6 = vector.extract_strided_slice %4 {offsets = [40, 0], sizes = [40, 128], strides = [1, 1]} : vector<80x128xf32> to vector<40x128xf32>
    %7 = arith.addf %5, %6 : vector<40x128xf32>
    %8 = math.sqrt %7 : vector<40x128xf32>
    %c0_4 = arith.constant 0 : index
    %c0_5 = arith.constant 0 : index
    %9 = vector.load %arg4[%c0_4, %c0_5] : memref<16x40xf32, #tpu.memory_space<vmem>>, vector<16x40xf32>
    %cst_6 = arith.constant dense<0.000000e+00> : vector<16x128xf32>
    %10 = tpu.matmul %9, %8, %cst_6 {dimension_numbers = #tpu.dot_dimension_numbers<[1], [0], [0], [1], [0, 0, 1, 1], [], []>} : vector<16x40xf32>, vector<40x128xf32>, vector<16x128xf32> -> vector<16x128xf32>
    %11 = arith.mulf %10, %10 : vector<16x128xf32>
    %cst_7 = arith.constant 9.99999993E-9 : f32
    %12 = vector.broadcast %cst_7 : f32 to vector<16x128xf32>
    %13 = arith.addf %11, %12 : vector<16x128xf32>
    %14 = math.log %13 : vector<16x128xf32>
    %cst_8 = arith.constant 4.34294462 : f32
    %15 = vector.broadcast %cst_8 : f32 to vector<16x128xf32>
    %16 = arith.mulf %15, %14 : vector<16x128xf32>
    %c0_9 = arith.constant 0 : index
    %c0_10 = arith.constant 0 : index
    %c0_11 = arith.constant 0 : index
    %17 = vector.load %arg5[%c0_9, %c0_10, %c0_11] : memref<1x16x128xf32, #tpu.memory_space<vmem>>, vector<1x16x128xf32>
    %18 = vector.shape_cast %17 : vector<1x16x128xf32> to vector<16x128xf32>
    %19 = vector.shape_cast %16 : vector<16x128xf32> to vector<1x16x128xf32>
    tpu.vector_store %arg5[%c0_9, %c0_10, %c0_11], %19 {strides = array<i32>} : memref<1x16x128xf32, #tpu.memory_space<vmem>>, vector<1x16x128xf32>,
    return
  }
  func.func @transform_0(%arg0: i32, %arg1: i32) -> (i32, i32, i32) {
    %c0_i32 = arith.constant 0 : i32
    %c0_i32_0 = arith.constant 0 : i32
    return %arg0, %arg1, %c0_i32 : i32, i32, i32
  }
  func.func @transform_1(%arg0: i32, %arg1: i32) -> (i32, i32) {
    %c0_i32 = arith.constant 0 : i32
    %c0_i32_0 = arith.constant 0 : i32
    %c0_i32_1 = arith.constant 0 : i32
    return %c0_i32, %c0_i32_0 : i32, i32
  }
  func.func @transform_2(%arg0: i32, %arg1: i32) -> (i32, i32) {
    %c0_i32 = arith.constant 0 : i32
    %c0_i32_0 = arith.constant 0 : i32
    %c0_i32_1 = arith.constant 0 : i32
    return %c0_i32, %c0_i32_0 : i32, i32
  }
  func.func @transform_3(%arg0: i32, %arg1: i32) -> (i32, i32, i32) {
    %c0_i32 = arith.constant 0 : i32
    %c0_i32_0 = arith.constant 0 : i32
    return %arg0, %c0_i32, %arg1 : i32, i32, i32
  }
}

</mosaic_0001>

<llo_original>
// kernel: tpu_custom_call.1
$region0: #{tpu_custom_call.1}
  #allocation0 [shape = 'u32[]', space=smem, size = 0x4, offset = 0x4, fixed_abs, tag = 'smem constant byte address 0x4 - core index']
  #allocation1 [shape = 'u32[144,128]{1,0:T(1,128)}', space=vmem, size = 0x12000, scoped, tag = 'internal scratch']
  %s0 = inlined_call_operand.vmem [shape: f32[2,128,64], index: 0, kind: input, shape index: {}]
  %s1 = inlined_call_operand.vmem [shape: f32[80,64], index: 1, kind: input, shape index: {}]
  %s2 = inlined_call_operand.vmem [shape: f32[16,40], index: 2, kind: input, shape index: {}]
  %s3 = inlined_call_operand.hbm [shape: f32[2,16,128], index: 3, kind: output, shape index: {}]
  %s4 = sld [smem:[#allocation0]]
  $region45: #{tpu_custom_call.1} parent=0
    _
  %s6 = ssub.s32 1, %s4
  %s7 = scalar_select 0, %s6, %s4
  $region1: #{tpu_custom_call.1} parent=0
    #allocation2 [shape = 'u8[16384]{0}', space=vmem, size = 0x4000, scoped, tag = 'output window, operand 0']
    #allocation3 [shape = 's32[2]{0}', space=sflag, size = 0x8, scoped, tag = 'scoped memory for tpu_custom_call.1']
    %8 = vsyncpa [#allocation3], 0
    %s9 = scalar_lea.sflag [#allocation3], 1
    %10 = vsyncpa %s9, 0
    loop: start=0, step=1, limit=4
    $region2: #{tpu_custom_call.1} parent=1 // loop_pre_header
      _
    $region3: #{tpu_custom_call.1} parent=1 // loop_header
      %s12 = sphi 0, %s16
      %p13 = scmp.ge.s32.totalorder %s12, 4
      %s19 = sphi 0, %s31
      %s20 = sphi 0, %s27
      %s21 = sphi 0, %s19
      %s22 = sphi 0, %s20
      %s23 = sphi 0, %s21
      %s24 = sphi 0, %s22
      %s36 = sphi 0, %s38
      %s39 = sphi 0, %s36
      %s40 = sphi 0, %s39
      %s56 = sphi 0, %s40
      %s60 = sphi 0, %s60
      %s62 = sphi 0, %s60
      %s63 = sphi 0, %s62
      %s77 = sphi 0, %s63
      %s81 = sphi 0, %s81
      %s83 = sphi 0, %s81
      %s84 = sphi 0, %s83
      %s98 = sphi 0, %s84
      %s106 = sphi 0, %s108
      %s109 = sphi 0, %s106
      %s110 = sphi 0, %s109
      %s126 = sphi 0, %s110
    $region4: #{tpu_custom_call.1} parent=1 // loop_header_branch
      %15 = sbr.rel (%p13) target = $region8
    $region5: #{tpu_custom_call.1} parent=1 // loop_body
      %s17 = ssub.s32 %s12, 1
      %s18 = ssub.s32 %s12, 2
      %s25 = sadd.s32 1, %s20
      %p26 = scmp.ge.s32.totalorder %s25, 1
      %s27 = scalar_select %p26, 0, %s25
      %s28 = sadd.s32 1, %s19
      %s29 = scalar_select %p26, %s28, %s19
      %p30 = scmp.ge.s32.totalorder %s29, 2
      %s31 = scalar_select %p30, 0, %s29
      %s32 = ssub.s32 %s19, %s31
      %s33 = ssub.s32 %s20, %s27
      %s34 = sor.u32 %s32, %s33
      %p35 = scmp.eq.s32.totalorder %s34, 0
      %s37 = sadd.s32 %s36, 1
      %s38 = scalar_select %p35, %s36, %s37
      %p41 = pneg %p35
      %p42 = scmp.eq.s32.totalorder %s12, 1
      %p43 = por %p41, %p42
      %p44 = scmp.ne.s32.totalorder %s36, %s39
      %p45 = scmp.eq.s32.totalorder %s12, 0
      %p46 = por %p44, %p45
      %p47 = scmp.ne.s32.totalorder %s36, %s39
      %p48 = scmp.eq.s32.totalorder %s17, 1
      %p49 = por %p47, %p48
      %p50 = scmp.ne.s32.totalorder %s39, %s40
      %p51 = scmp.eq.s32.totalorder %s17, 0
      %p52 = por %p50, %p51
      %p53 = scmp.ne.s32.totalorder %s39, %s40
      %p54 = scmp.eq.s32.totalorder %s18, 1
      %p55 = por %p53, %p54
      %p57 = scmp.ne.s32.totalorder %s40, %s56
      %p58 = scmp.eq.s32.totalorder %s18, 0
      %p59 = por %p57, %p58
      %s61 = sadd.s32 %s60, 1
      %p64 = scmp.eq.s32.totalorder %s12, 1
      %p65 = scmp.ne.s32.totalorder %s60, %s62
      %p66 = scmp.eq.s32.totalorder %s12, 0
      %p67 = por %p65, %p66
      %p68 = scmp.ne.s32.totalorder %s60, %s62
      %p69 = scmp.eq.s32.totalorder %s17, 1
      %p70 = por %p68, %p69
      %p71 = scmp.ne.s32.totalorder %s62, %s63
      %p72 = scmp.eq.s32.totalorder %s17, 0
      %p73 = por %p71, %p72
      %p74 = scmp.ne.s32.totalorder %s62, %s63
      %p75 = scmp.eq.s32.totalorder %s18, 1
      %p76 = por %p74, %p75
      %p78 = scmp.ne.s32.totalorder %s63, %s77
      %p79 = scmp.eq.s32.totalorder %s18, 0
      %p80 = por %p78, %p79
      %s82 = sadd.s32 %s81, 1
      %p85 = scmp.eq.s32.totalorder %s12, 1
      %p86 = scmp.ne.s32.totalorder %s81, %s83
      %p87 = scmp.eq.s32.totalorder %s12, 0
      %p88 = por %p86, %p87
      %p89 = scmp.ne.s32.totalorder %s81, %s83
      %p90 = scmp.eq.s32.totalorder %s17, 1
      %p91 = por %p89, %p90
      %p92 = scmp.ne.s32.totalorder %s83, %s84
      %p93 = scmp.eq.s32.totalorder %s17, 0
      %p94 = por %p92, %p93
      %p95 = scmp.ne.s32.totalorder %s83, %s84
      %p96 = scmp.eq.s32.totalorder %s18, 1
      %p97 = por %p95, %p96
      %p99 = scmp.ne.s32.totalorder %s84, %s98
      %p100 = scmp.eq.s32.totalorder %s18, 0
      %p101 = por %p99, %p100
      %s102 = ssub.s32 %s19, %s31
      %s103 = ssub.s32 %s20, %s27
      %s104 = sor.u32 %s102, %s103
      %p105 = scmp.eq.s32.totalorder %s104, 0
      %s107 = sadd.s32 %s106, 1
      %s108 = scalar_select %p105, %s106, %s107
      %p111 = pneg %p105
      %p112 = scmp.eq.s32.totalorder %s12, 1
      %p113 = por %p111, %p112
      %p114 = scmp.ne.s32.totalorder %s106, %s109
      %p115 = scmp.eq.s32.totalorder %s12, 0
      %p116 = por %p114, %p115
      %p117 = scmp.ne.s32.totalorder %s106, %s109
      %p118 = scmp.eq.s32.totalorder %s17, 1
      %p119 = por %p117, %p118
      %p120 = scmp.ne.s32.totalorder %s109, %s110
      %p121 = scmp.eq.s32.totalorder %s17, 0
      %p122 = por %p120, %p121
      %p123 = scmp.ne.s32.totalorder %s109, %s110
      %p124 = scmp.eq.s32.totalorder %s18, 1
      %p125 = por %p123, %p124
      %p127 = scmp.ne.s32.totalorder %s110, %s126
      %p128 = scmp.eq.s32.totalorder %s18, 0
      %p129 = por %p127, %p128
      %p130 = scmp.le.s32.totalorder 1, %s12
      %p131 = scmp.lt.s32.totalorder %s12, 3
      %p132 = pnand %p130, %p131
      %p133 = pneg %p132
      // Predicated region
      $region9: #{tpu_custom_call.1} parent=5 // pred_check
        _
      $region10: #{tpu_custom_call.1} parent=5 // pred_check_branch
        %135 = sbr.rel (%p132) target = $region12
      $region11: #{tpu_custom_call.1} parent=5 // pred_region
        %s136 = ssub.s32 %s12, 1
        // Predicated region
        $region13: #{tpu_custom_call.1} parent=11 // pred_check
          %p137 = pneg %p73
        $region14: #{tpu_custom_call.1} parent=11 // pred_check_branch
          %139 = sbr.rel (%p137) target = $region16
        $region15: #{tpu_custom_call.1} parent=11 // pred_region
          _
        $region16: #{tpu_custom_call.1} parent=11 // pred_fallthru
          _
        // Predicated region
        $region17: #{tpu_custom_call.1} parent=11 // pred_check
          %p140 = pneg %p94
        $region18: #{tpu_custom_call.1} parent=11 // pred_check_branch
          %142 = sbr.rel (%p140) target = $region20
        $region19: #{tpu_custom_call.1} parent=11 // pred_region
          _
        $region20: #{tpu_custom_call.1} parent=11 // pred_fallthru
          _
      $region12: #{tpu_custom_call.1} parent=5 // pred_fallthru
        _
      %p143 = scmp.lt.s32.totalorder %s12, 2
      // Predicated region
      $region21: #{tpu_custom_call.1} parent=5 // pred_check
        %p144 = pneg %p143
      $region22: #{tpu_custom_call.1} parent=5 // pred_check_branch
        %146 = sbr.rel (%p144) target = $region24
      $region23: #{tpu_custom_call.1} parent=5 // pred_region
        // Predicated region
        $region25: #{tpu_custom_call.1} parent=23 // pred_check
          %p147 = pneg %p46
        $region26: #{tpu_custom_call.1} parent=23 // pred_check_branch
          %149 = sbr.rel (%p147) target = $region28
        $region27: #{tpu_custom_call.1} parent=23 // pred_region
          %s150 = smul.u32 16, %s20
          %p151 = scmp.lt.s32.totalorder %s19, 1
          %s152 = scalar_select %p151, %s19, 1
          %p153 = scmp.lt.s32.totalorder %s150, 15
          %s154 = scalar_select %p153, %s150, 15
          %s155 = smul.addr %s152, 16
          %s156 = sadd.s32 %s154, %s155
          %s157 = smul.addr %s156, 8
          %s158 = scalar_lea.vmem %s0, %s157
          %s159 = smul.u32 16, %s20
        $region28: #{tpu_custom_call.1} parent=23 // pred_fallthru
          _
      $region24: #{tpu_custom_call.1} parent=5 // pred_fallthru
        _
      %p160 = scmp.le.s32.totalorder 1, %s12
      %p161 = scmp.lt.s32.totalorder %s12, 3
      %p162 = pnand %p160, %p161
      %p163 = pneg %p162
      // Predicated region
      $region29: #{tpu_custom_call.1} parent=5 // pred_check
        _
      $region30: #{tpu_custom_call.1} parent=5 // pred_check_branch
        %165 = sbr.rel (%p162) target = $region32
      $region31: #{tpu_custom_call.1} parent=5 // pred_region
        %s166 = ssub.s32 %s12, 1
        %s167 = smul.u32 16, %s22
        %p168 = scmp.lt.s32.totalorder %s21, 1
        %s169 = scalar_select %p168, %s21, 1
        %p170 = scmp.lt.s32.totalorder %s167, 15
        %s171 = scalar_select %p170, %s167, 15
        %s172 = smul.addr %s169, 16
        %s173 = sadd.s32 %s171, %s172
        %s174 = smul.addr %s173, 8
        %s175 = scalar_lea.vmem %s0, %s174
        %p176 = pneg %p52
        %p177 = pneg %p49
        %p178 = pneg %p73
        %p179 = pneg %p70
        %p180 = pneg %p94
        %p181 = pneg %p91
        %p182 = pneg %p122
        %p183 = pneg %p119
        %s184 = sand.u32 %s109, 1
        %s185 = scalar_lea.sflag [#allocation3], %s184
        %s186 = sand.u32 %s109, 1
        %s187 = smul.addr %s186, 16
        %s188 = scalar_lea.vmem [#allocation2], %s187
        %s189 = smul.u32 16, %s22
        %p190 = scmp.lt.s32.totalorder %s21, 1
        %s191 = scalar_select %p190, %s21, 1
        %p192 = scmp.lt.s32.totalorder %s189, 15
        %s193 = scalar_select %p192, %s189, 15
        %s194 = smul.addr %s191, 16
        %s195 = sadd.s32 %s193, %s194
        %s196 = smul.addr %s195, 8
        %s197 = scalar_lea.vmem %s0, %s196
        %s198 = smul.u32 16, %s22
        %v199 = vld [vmem:[%s1] sm:$0xff]
        %v200 = vld [vmem:[%s1 + $0x8] sm:$0xff]
        %v201 = vld [vmem:[%s1 + $0x10] sm:$0xff]
        %v202 = vld [vmem:[%s1 + $0x18] sm:$0xff]
        %v203 = vld [vmem:[%s1 + $0x20] sm:$0xff]
        %v204 = vld [vmem:[%s1 + $0x28] sm:$0xff]
        %v205 = vld [vmem:[%s1 + $0x30] sm:$0xff]
        %v206 = vld [vmem:[%s1 + $0x38] sm:$0xff]
        %v207 = vld [vmem:[%s1 + $0x40] sm:$0xff]
        %v208 = vld [vmem:[%s1 + $0x48] sm:$0xff]
        %v209 = vld [vmem:[%s197] sm:$0xff]
        %v210 = vld [vmem:[%s197 + $0x8] sm:$0xff]
        %v211 = vld [vmem:[%s197 + $0x10] sm:$0xff]
        %v212 = vld [vmem:[%s197 + $0x18] sm:$0xff]
        %v213 = vld [vmem:[%s197 + $0x20] sm:$0xff]
        %v214 = vld [vmem:[%s197 + $0x28] sm:$0xff]
        %v215 = vld [vmem:[%s197 + $0x30] sm:$0xff]
        %v216 = vld [vmem:[%s197 + $0x38] sm:$0xff]
        %v217 = vld [vmem:[%s197 + $0x40] sm:$0xff]
        %v218 = vld [vmem:[%s197 + $0x48] sm:$0xff]
        %v219 = vld [vmem:[%s197 + $0x50] sm:$0xff]
        %v220 = vld [vmem:[%s197 + $0x58] sm:$0xff]
        %v221 = vld [vmem:[%s197 + $0x60] sm:$0xff]
        %v222 = vld [vmem:[%s197 + $0x68] sm:$0xff]
        %v223 = vld [vmem:[%s197 + $0x70] sm:$0xff]
        %v224 = vld [vmem:[%s197 + $0x78] sm:$0xff]
        %vm225 = vcmask 523264
        %v227 = vsel %vm225, %v199, 0
        %v230 = vsel %vm225, %v200, 0
        %v233 = vsel %vm225, %v201, 0
        %v236 = vsel %vm225, %v202, 0
        %v239 = vsel %vm225, %v203, 0
        %v242 = vsel %vm225, %v204, 0
        %v245 = vsel %vm225, %v205, 0
        %v248 = vsel %vm225, %v206, 0
        %v251 = vsel %vm225, %v207, 0
        %v254 = vsel %vm225, %v208, 0
        %v257 = vsel %vm225, %v209, 0
        %v260 = vsel %vm225, %v210, 0
        %v263 = vsel %vm225, %v211, 0
        %v266 = vsel %vm225, %v212, 0
        %v269 = vsel %vm225, %v213, 0
        %v272 = vsel %vm225, %v214, 0
        %v275 = vsel %vm225, %v215, 0
        %v278 = vsel %vm225, %v216, 0
        %v281 = vsel %vm225, %v217, 0
        %v284 = vsel %vm225, %v218, 0
        %v287 = vsel %vm225, %v219, 0
        %v290 = vsel %vm225, %v220, 0
        %v293 = vsel %vm225, %v221, 0
        %v296 = vsel %vm225, %v222, 0
        %v299 = vsel %vm225, %v223, 0
        %v302 = vsel %vm225, %v224, 0
        %304 = vmatprep.subr.mxu0 0.0
        %305 = vmatpush1.xpose.msra.mxu0 %v257
        %306 = vmatprep.subr.mxu0 0.0
        %307 = vmatpush1.xpose.msra.mxu0 %v260
        %308 = vmatprep.subr.mxu0 0.0
        %309 = vmatpush1.xpose.msra.mxu0 %v263
        %310 = vmatprep.subr.mxu0 0.0
        %311 = vmatpush1.xpose.msra.mxu0 %v266
        %312 = vmatprep.subr.mxu0 0.0
        %313 = vmatpush1.xpose.msra.mxu0 %v269
        %314 = vmatprep.subr.mxu0 0.0
        %315 = vmatpush1.xpose.msra.mxu0 %v272
        %316 = vmatprep.subr.mxu0 0.0
        %317 = vmatpush1.xpose.msra.mxu0 %v275
        %318 = vmatprep.subr.mxu0 0.0
        %319 = vmatpush1.xpose.msra.mxu0 %v278
        %320 = vmatprep.subr.mxu0 0.0
        %321 = vmatpush1.xpose.msra.mxu0 %v281
        %322 = vmatprep.subr.mxu0 0.0
        %323 = vmatpush1.xpose.msra.mxu0 %v284
        %324 = vmatprep.subr.mxu0 0.0
        %325 = vmatpush1.xpose.msra.mxu0 %v287
        %326 = vmatprep.subr.mxu0 0.0
        %327 = vmatpush1.xpose.msra.mxu0 %v290
        %328 = vmatprep.subr.mxu0 0.0
        %329 = vmatpush1.xpose.msra.mxu0 %v293
        %330 = vmatprep.subr.mxu0 0.0
        %331 = vmatpush1.xpose.msra.mxu0 %v296
        %332 = vmatprep.subr.mxu0 0.0
        %333 = vmatpush1.xpose.msra.mxu0 %v299
        %334 = vmatprep.subr.mxu0 0.0
        %335 = vmatpush1.xpose.msra.mxu0 %v302
        %336 = vmatprep.subr.mxu0 0.0
        %337 = vmatpush1.xpose.msra.mxu0 0.0
        %338 = vmatprep.subr.mxu0 0.0
        %339 = vmatpush1.xpose.msra.mxu0 0.0
        %340 = vmatprep.subr.mxu0 0.0
        %341 = vmatpush1.xpose.msra.mxu0 0.0
        %342 = vmatprep.subr.mxu0 0.0
        %343 = vmatpush1.xpose.msra.mxu0 0.0
        %344 = vmatprep.subr.mxu0 0.0
        %345 = vmatpush1.xpose.msra.mxu0 0.0
        %346 = vmatprep.subr.mxu0 0.0
        %347 = vmatpush1.xpose.msra.mxu0 0.0
        %348 = vmatprep.subr.mxu0 0.0
        %349 = vmatpush1.xpose.msra.mxu0 0.0
        %350 = vmatprep.subr.mxu0 0.0
        %351 = vmatpush1.xpose.msra.mxu0 0.0
        %352 = vmatprep.subr.mxu0 0.0
        %353 = vmatpush1.xpose.msra.mxu0 0.0
        %354 = vmatprep.subr.mxu0 0.0
        %355 = vmatpush1.xpose.msra.mxu0 0.0
        %356 = vmatprep.subr.mxu0 0.0
        %357 = vmatpush1.xpose.msra.mxu0 0.0
        %358 = vmatprep.subr.mxu0 0.0
        %359 = vmatpush1.xpose.msra.mxu0 0.0
        %360 = vmatprep.subr.mxu0 0.0
        %361 = vmatpush1.xpose.msra.mxu0 0.0
        %362 = vmatprep.subr.mxu0 0.0
        %363 = vmatpush1.xpose.msra.mxu0 0.0
        %364 = vmatprep.subr.mxu0 0.0
        %365 = vmatpush1.xpose.msra.mxu0 0.0
        %366 = vmatprep.subr.mxu0 0.0
        %367 = vmatpush1.xpose.msra.mxu0 0.0
        %368 = vmatprep.mubr.f32.mxu0 0.0
        %369 = vmatmul.mubr.f32.gmra.mrb[0].mxu0 %v227
        %v370 = vpop.f32.mrb[0].mxu0
        %v371 = vadd.f32 0.0, %v370
        %v372 = vpop.f32.mrb[0].mxu0
        %373 = vmatprep.mubr.f32.mxu0 0.0
        %374 = vmatmul.mubr.f32.gmra.mrb[0].mxu0 %v230
        %v375 = vpop.f32.mrb[0].mxu0
        %v376 = vadd.f32 0.0, %v375
        %v377 = vpop.f32.mrb[0].mxu0
        %378 = vmatprep.mubr.f32.mxu0 0.0
        %379 = vmatmul.mubr.f32.gmra.mrb[0].mxu0 %v233
        %v380 = vpop.f32.mrb[0].mxu0
        %v381 = vadd.f32 0.0, %v380
        %v382 = vpop.f32.mrb[0].mxu0
        %383 = vmatprep.mubr.f32.mxu0 0.0
        %384 = vmatmul.mubr.f32.gmra.mrb[0].mxu0 %v236
        %v385 = vpop.f32.mrb[0].mxu0
        %v386 = vadd.f32 0.0, %v385
        %v387 = vpop.f32.mrb[0].mxu0
        %388 = vmatprep.mubr.f32.mxu0 0.0
        %389 = vmatmul.mubr.f32.gmra.mrb[0].mxu0 %v239
        %v390 = vpop.f32.mrb[0].mxu0
        %v391 = vadd.f32 0.0, %v390
        %v392 = vpop.f32.mrb[0].mxu0
        %393 = vmatprep.mubr.f32.mxu0 0.0
        %394 = vmatmul.mubr.f32.gmra.mrb[0].mxu0 %v242
        %v395 = vpop.f32.mrb[0].mxu0
        %v396 = vadd.f32 0.0, %v395
        %v397 = vpop.f32.mrb[0].mxu0
        %398 = vmatprep.mubr.f32.mxu0 0.0
        %399 = vmatmul.mubr.f32.gmra.mrb[0].mxu0 %v245
        %v400 = vpop.f32.mrb[0].mxu0
        %v401 = vadd.f32 0.0, %v400
        %v402 = vpop.f32.mrb[0].mxu0
        %403 = vmatprep.mubr.f32.mxu0 0.0
        %404 = vmatmul.mubr.f32.gmra.mrb[0].mxu0 %v248
        %v405 = vpop.f32.mrb[0].mxu0
        %v406 = vadd.f32 0.0, %v405
        %v407 = vpop.f32.mrb[0].mxu0
        %408 = vmatprep.mubr.f32.mxu0 0.0
        %409 = vmatmul.mubr.f32.gmra.mrb[0].mxu0 %v251
        %v410 = vpop.f32.mrb[0].mxu0
        %v411 = vadd.f32 0.0, %v410
        %v412 = vpop.f32.mrb[0].mxu0
        %413 = vmatprep.mubr.f32.mxu0 0.0
        %414 = vmatmul.mubr.f32.gmra.mrb[0].mxu0 %v254
        %v415 = vpop.f32.mrb[0].mxu0
        %v416 = vadd.f32 0.0, %v415
        %v417 = vpop.f32.mrb[0].mxu0
        %418 = vdwg.mxu0
        %v419 = vmul.f32 %v371, %v371
        %v420 = vmul.f32 %v376, %v376
        %v421 = vmul.f32 %v381, %v381
        %v422 = vmul.f32 %v386, %v386
        %v423 = vmul.f32 %v391, %v391
        %v424 = vmul.f32 %v396, %v396
        %v425 = vmul.f32 %v401, %v401
        %v426 = vmul.f32 %v406, %v406
        %v427 = vmul.f32 %v411, %v411
        %v428 = vmul.f32 %v416, %v416
        %v429 = vadd.f32 %v419, %v424
        %v430 = vadd.f32 %v420, %v425
        %v431 = vadd.f32 %v421, %v426
        %v432 = vadd.f32 %v422, %v427
        %v433 = vadd.f32 %v423, %v428
        %v434 = vrsqrt.pop %v429
        %v435 = vmul.f32 %v429, %v434
        %vm436 = vcmp.eq.f32.partialorder %v429, inf
        %v437 = vsel %vm436, %v429, %v435
        %vm438 = vcmp.eq.f32.partialorder %v429, 0.0
        %v439 = vand.u32 %v429, 2147483648
        %v440 = vsel %vm438, %v439, %v437
        %v441 = vrsqrt.pop %v430
        %v442 = vmul.f32 %v430, %v441
        %vm443 = vcmp.eq.f32.partialorder %v430, inf
        %v444 = vsel %vm443, %v430, %v442
        %vm445 = vcmp.eq.f32.partialorder %v430, 0.0
        %v446 = vand.u32 %v430, 2147483648
        %v447 = vsel %vm445, %v446, %v444
        %v448 = vrsqrt.pop %v431
        %v449 = vmul.f32 %v431, %v448
        %vm450 = vcmp.eq.f32.partialorder %v431, inf
        %v451 = vsel %vm450, %v431, %v449
        %vm452 = vcmp.eq.f32.partialorder %v431, 0.0
        %v453 = vand.u32 %v431, 2147483648
        %v454 = vsel %vm452, %v453, %v451
        %v455 = vrsqrt.pop %v432
        %v456 = vmul.f32 %v432, %v455
        %vm457 = vcmp.eq.f32.partialorder %v432, inf
        %v458 = vsel %vm457, %v432, %v456
        %vm459 = vcmp.eq.f32.partialorder %v432, 0.0
        %v460 = vand.u32 %v432, 2147483648
        %v461 = vsel %vm459, %v460, %v458
        %v462 = vrsqrt.pop %v433
        %v463 = vmul.f32 %v433, %v462
        %vm464 = vcmp.eq.f32.partialorder %v433, inf
        %v465 = vsel %vm464, %v433, %v463
        %vm466 = vcmp.eq.f32.partialorder %v433, 0.0
        %v467 = vand.u32 %v433, 2147483648
        %v468 = vsel %vm466, %v467, %v465
        %v469 = vld [vmem:[%s2] sm:$0xff]
        %v470 = vld [vmem:[%s2 + $0x8] sm:$0xff]
        %vm471 = vcmask 326656
        %v473 = vsel %vm471, %v469, 0
        %v476 = vsel %vm471, %v470, 0
        %478 = vmatprep.subr.mxu0 0.0
        %479 = vmatpush1.msra.mxu0 %v440
        %480 = vmatprep.subr.mxu0 0.0
        %481 = vmatpush1.msra.mxu0 %v447
        %482 = vmatprep.subr.mxu0 0.0
        %483 = vmatpush1.msra.mxu0 %v454
        %484 = vmatprep.subr.mxu0 0.0
        %485 = vmatpush1.msra.mxu0 %v461
        %486 = vmatprep.subr.mxu0 0.0
        %487 = vmatpush1.msra.mxu0 %v468
        %488 = vmatprep.subr.mxu0 0.0
        %489 = vmatpush1.msra.mxu0 0.0
        %490 = vmatprep.subr.mxu0 0.0
        %491 = vmatpush1.msra.mxu0 0.0
        %492 = vmatprep.subr.mxu0 0.0
        %493 = vmatpush1.msra.mxu0 0.0
        %494 = vmatprep.subr.mxu0 0.0
        %495 = vmatpush1.msra.mxu0 0.0
        %496 = vmatprep.subr.mxu0 0.0
        %497 = vmatpush1.msra.mxu0 0.0
        %498 = vmatprep.subr.mxu0 0.0
        %499 = vmatpush1.msra.mxu0 0.0
        %500 = vmatprep.subr.mxu0 0.0
        %501 = vmatpush1.msra.mxu0 0.0
        %502 = vmatprep.subr.mxu0 0.0
        %503 = vmatpush1.msra.mxu0 0.0
        %504 = vmatprep.subr.mxu0 0.0
        %505 = vmatpush1.msra.mxu0 0.0
        %506 = vmatprep.subr.mxu0 0.0
        %507 = vmatpush1.msra.mxu0 0.0
        %508 = vmatprep.subr.mxu0 0.0
        %509 = vmatpush1.msra.mxu0 0.0
        %510 = vmatprep.subr.mxu0 0.0
        %511 = vmatpush1.msra.mxu0 0.0
        %512 = vmatprep.subr.mxu0 0.0
        %513 = vmatpush1.msra.mxu0 0.0
        %514 = vmatprep.subr.mxu0 0.0
        %515 = vmatpush1.msra.mxu0 0.0
        %516 = vmatprep.subr.mxu0 0.0
        %517 = vmatpush1.msra.mxu0 0.0
        %518 = vmatprep.subr.mxu0 0.0
        %519 = vmatpush1.msra.mxu0 0.0
        %520 = vmatprep.subr.mxu0 0.0
        %521 = vmatpush1.msra.mxu0 0.0
        %522 = vmatprep.subr.mxu0 0.0
        %523 = vmatpush1.msra.mxu0 0.0
        %524 = vmatprep.subr.mxu0 0.0
        %525 = vmatpush1.msra.mxu0 0.0
        %526 = vmatprep.subr.mxu0 0.0
        %527 = vmatpush1.msra.mxu0 0.0
        %528 = vmatprep.subr.mxu0 0.0
        %529 = vmatpush1.msra.mxu0 0.0
        %530 = vmatprep.subr.mxu0 0.0
        %531 = vmatpush1.msra.mxu0 0.0
        %532 = vmatprep.subr.mxu0 0.0
        %533 = vmatpush1.msra.mxu0 0.0
        %534 = vmatprep.subr.mxu0 0.0
        %535 = vmatpush1.msra.mxu0 0.0
        %536 = vmatprep.subr.mxu0 0.0
        %537 = vmatpush1.msra.mxu0 0.0
        %538 = vmatprep.subr.mxu0 0.0
        %539 = vmatpush1.msra.mxu0 0.0
        %540 = vmatprep.subr.mxu0 0.0
        %541 = vmatpush1.msra.mxu0 0.0
        %542 = vmatprep.mubr.f32.mxu0 0.0
        %543 = vmatmul.mubr.f32.gmra.mrb[0].mxu0 %v473
        %v544 = vpop.f32.mrb[0].mxu0
        %v545 = vadd.f32 0.0, %v544
        %v546 = vpop.f32.mrb[0].mxu0
        %547 = vmatprep.mubr.f32.mxu0 0.0
        %548 = vmatmul.mubr.f32.gmra.mrb[0].mxu0 %v476
        %v549 = vpop.f32.mrb[0].mxu0
        %v550 = vadd.f32 0.0, %v549
        %v551 = vpop.f32.mrb[0].mxu0
        %552 = vdwg.mxu0
        %v553 = vmul.f32 %v545, %v545
        %v554 = vmul.f32 %v550, %v550
        %v555 = vadd.f32 %v553, 1e-08
        %v556 = vadd.f32 %v554, 1e-08
        %v557 = vlog2.pop %v555
        %v558 = vmul.f32 %v557, 0.6931472
        %v559 = vlog2.pop %v556
        %v560 = vmul.f32 %v559, 0.6931472
        %v561 = vmul.f32 %v558, 4.3429446
        %v562 = vmul.f32 %v560, 4.3429446
        %563 = vst [vmem:[%s188] sm:$0xff] %v561
        %564 = vst [vmem:[%s188 + $0x8] sm:$0xff] %v562
        %s565 = sand.u32 %s109, 1
        %s566 = scalar_lea.sflag [#allocation3], %s565
        %s567 = sand.u32 %s109, 1
        %s568 = smul.addr %s567, 16
        %s569 = scalar_lea.vmem [#allocation2], %s568
        // Predicated region
        $region33: #{tpu_custom_call.1} parent=31 // pred_check
          %p570 = pneg %p119
        $region34: #{tpu_custom_call.1} parent=31 // pred_check_branch
          %572 = sbr.rel (%p570) target = $region36
        $region35: #{tpu_custom_call.1} parent=31 // pred_region
          %s574 = ssub.s32 256, 256
          %575 = vsyncadd %s566, %s574
          %s576 = smul.addr %s21, 2
          %s577 = sadd.s32 %s22, %s576
          %s578 = smul.addr %s577, 128
          %s579 = scalar_lea.hbm %s3, %s578
          %s580 = sshll.u32 %s569, 4
          %s581 = int_to_ptr.vmem [resolvable:$true] %s580
          %586 = dma.vmem_to_hbm [thread:$0]  %s581, 256, %s579, %s566, 128, 128, 8
        $region36: #{tpu_custom_call.1} parent=31 // pred_fallthru
          _
      $region32: #{tpu_custom_call.1} parent=5 // pred_fallthru
        _
      %p587 = scmp.le.s32.totalorder 2, %s12
      // Predicated region
      $region37: #{tpu_custom_call.1} parent=5 // pred_check
        %p588 = pneg %p587
      $region38: #{tpu_custom_call.1} parent=5 // pred_check_branch
        %590 = sbr.rel (%p588) target = $region40
      $region39: #{tpu_custom_call.1} parent=5 // pred_region
        %s591 = ssub.s32 %s12, 2
        // Predicated region
        $region41: #{tpu_custom_call.1} parent=39 // pred_check
          %p592 = pneg %p125
        $region42: #{tpu_custom_call.1} parent=39 // pred_check_branch
          %594 = sbr.rel (%p592) target = $region44
        $region43: #{tpu_custom_call.1} parent=39 // pred_region
          %s595 = sand.u32 %s110, 1
          %s596 = scalar_lea.sflag [#allocation3], %s595
          %s597 = sand.u32 %s110, 1
          %s598 = smul.addr %s597, 16
          %s599 = scalar_lea.vmem [#allocation2], %s598
          %600 = dma.done %s596, 256
        $region44: #{tpu_custom_call.1} parent=39 // pred_fallthru
          _
      $region40: #{tpu_custom_call.1} parent=5 // pred_fallthru
        _
    $region6: #{tpu_custom_call.1} parent=1 // loop_footer
      %s16 = sadd.s32 1, %s12
    $region7: #{tpu_custom_call.1} parent=1 // loop_footer_branch
      %11 = sbr.rel target = $region3
    $region8: #{tpu_custom_call.1} parent=1 // loop_exit
      _
    %601 = vsyncpa [#allocation3], 1
    %s602 = scalar_lea.sflag [#allocation3], 1
    %603 = vsyncpa %s602, 1

</llo_original>
